<compile_context>
chip_gen: v7x
topology: tpu7x:2x2x1
jax: 0.10.0
libtpu: 0.0.40
codegen_flags: <defaults>
</compile_context>

<pallas_src>
import functools
import math

import jax
import jax.numpy as jnp
from jax import lax
from jax.experimental import pallas as pl
from jax.experimental.pallas import tpu as pltpu

_LANE = 128
_ELEM_BUDGET = 512 * 1024           # elements per logits block (~2 MiB in f32)
_MAX_TILE_V = 2048                  # target vocab tile (multiple of 128)
_MAX_TILE_ROWS = 256
_VMEM_LIMIT_BYTES = 48 * 1024 * 1024  # < v7x 64 MiB physical, > 32 MiB default


def _label_smoothing_kernel(logits_ref, tgt_ref, out_ref,
                            m_sc, se_sc, sl_sc, tl_sc, *,
                            vocab, padding_idx, confidence, smoothing):
    """Online (over vocab tiles) closed-form per-row KL, ignored rows -> 0."""
    j = pl.program_id(1)
    tile_v = logits_ref.shape[1]

    @pl.when(j == 0)
    def _():
        m_sc[...] = jnp.full_like(m_sc, -jnp.inf)   # running row max
        se_sc[...] = jnp.zeros_like(se_sc)          # running sum(exp(x - m))
        sl_sc[...] = jnp.zeros_like(sl_sc)          # running sum(x)
        tl_sc[...] = jnp.zeros_like(tl_sc)          # target logit pick

    x_nat = logits_ref[...]                                   # (TM, TV) native
    tile_max = jnp.max(x_nat, axis=-1, keepdims=True).astype(jnp.float32)
    x = x_nat.astype(jnp.float32)                             # (TM, TV) f32

    # Online logsumexp update.
    m_prev = m_sc[...]
    m_new = jnp.maximum(m_prev, tile_max)
    alpha = jnp.exp(m_prev - m_new)                           # EUP; 0 at j==0
    se_sc[...] = alpha * se_sc[...] + jnp.sum(
        jnp.exp(x - m_new), axis=-1, keepdims=True)
    m_sc[...] = m_new

    # Running sum of logits (for the eps * sum_v(logits) term).
    sl_sc[...] = sl_sc[...] + jnp.sum(x, axis=-1, keepdims=True)

    # Target-logit pick: compare against a global column index (no gather).
    tgt = tgt_ref[...]                                        # (TM, 1) int32
    safe_tgt = jnp.where(tgt == padding_idx, 0, tgt)          # masked_fill(.., 0)
    col = lax.broadcasted_iota(jnp.int32, x.shape, 1) + j * tile_v
    tl_sc[...] = tl_sc[...] + jnp.sum(
        jnp.where(col == safe_tgt, x, 0.0), axis=-1, keepdims=True)

    @pl.when(j == pl.num_programs(1) - 1)
    def _():
        eps = smoothing / (vocab - 1)
        # C = conf*log(conf) + (V-1)*eps*log(eps), with xlogy(0, .) == 0.
        const = 0.0
        if confidence > 0.0:
            const += confidence * math.log(confidence)
        if eps > 0.0:
            const += (vocab - 1) * eps * math.log(eps)
        lse = jnp.log(se_sc[...])
        row_kl = (const + m_sc[...] + lse
                  - eps * sl_sc[...]
                  - (confidence - eps) * tl_sc[...])          # (TM, 1)
        ignore = tgt_ref[...] == padding_idx
        out_ref[...] = jnp.where(ignore, 0.0, row_kl)


def _choose_tile_v(vocab):
    """Largest multiple-of-128 divisor of V that is <= _MAX_TILE_V, else V."""
    if vocab <= _MAX_TILE_V:
        return vocab
    for k in range(_MAX_TILE_V // _LANE, 0, -1):
        tv = k * _LANE
        if vocab % tv == 0:
            return tv
    return vocab  # no clean divisor; keep the vocab untiled


def _choose_tiles(n_rows, vocab):
    tile_v = _choose_tile_v(vocab)
    tile_rows = _ELEM_BUDGET // max(tile_v, 1)
    tile_rows = max(8, min(_MAX_TILE_ROWS, (tile_rows // 8) * 8))
    if n_rows <= tile_rows:
        tile_rows = max(n_rows, 1)   # single tile; block dim == full array dim
    return tile_rows, tile_v


def label_smoothing_loss(preds, target, *, beta, ignore_index,
                         normalize_length=True):
    """JAX/Pallas equivalent of LabelSmoothingLoss.forward."""
    batch_size = preds.shape[0]
    vocab = preds.shape[-1]
    x = preds.reshape(-1, vocab)               # native dtype on the wire
    tgt = target.reshape(-1).astype(jnp.int32)
    n_rows = x.shape[0]

    smoothing = float(beta)
    confidence = 1.0 - smoothing

    tile_rows, tile_v = _choose_tiles(n_rows, vocab)
    num_row_tiles = pl.cdiv(n_rows, tile_rows)
    num_v_tiles = vocab // tile_v
    padded_rows = num_row_tiles * tile_rows

    # Pad ONLY the cheap int32 target vector; logits are never copied.
    if padded_rows != n_rows:
        tgt = jnp.concatenate(
            [tgt, jnp.full((padded_rows - n_rows,), ignore_index, jnp.int32)])
    tgt_col = tgt.reshape(padded_rows, 1)

    kernel = functools.partial(
        _label_smoothing_kernel, vocab=vocab, padding_idx=int(ignore_index),
        confidence=confidence, smoothing=smoothing)

    # TODO(synk): output stays (rows, 1); lane-dense per-tile output is a
    # further (small) store-epilogue optimization.
    row_kl = pl.pallas_call(
        kernel,
        out_shape=jax.ShapeDtypeStruct((padded_rows, 1), jnp.float32),
        grid_spec=pltpu.PrefetchScalarGridSpec(
            num_scalar_prefetch=0,
            grid=(num_row_tiles, num_v_tiles),
            in_specs=[
                pl.BlockSpec((tile_rows, tile_v), lambda i, j: (i, j)),  # logits
                pl.BlockSpec((tile_rows, 1), lambda i, j: (i, 0)),       # target
            ],
            out_specs=pl.BlockSpec((tile_rows, 1), lambda i, j: (i, 0)),
            scratch_shapes=[pltpu.VMEM((tile_rows, 1), jnp.float32)] * 4,
        ),
        compiler_params=pltpu.CompilerParams(
            dimension_semantics=("parallel", "arbitrary"),
            vmem_limit_bytes=_VMEM_LIMIT_BYTES),
    )(x, tgt_col)

    loss_sum = jnp.sum(row_kl)

    # Denominator glue (mirrors the PyTorch code):
    #   total = len(target) - ignore.sum()
    ignore = target.reshape(-1) == ignore_index
    total = (n_rows - jnp.sum(ignore.astype(jnp.int32))).astype(jnp.float32)
    denom = total if normalize_length else jnp.float32(batch_size)
    return loss_sum / denom


def _reference(preds, target, *, beta, ignore_index, normalize_length=True):
    """Pure-JAX transcription of the PyTorch forward, for verification."""
    batch_size = preds.shape[0]
    vocab = preds.shape[-1]
    x = preds.reshape(-1, vocab).astype(jnp.float32)
    t = target.reshape(-1)
    n = t.shape[0]
    smoothing = float(beta)
    confidence = 1.0 - smoothing
    eps = smoothing / (vocab - 1)
    ignore = t == ignore_index
    total = (n - jnp.sum(ignore.astype(jnp.int32))).astype(jnp.float32)
    t_safe = jnp.where(ignore, 0, t)
    true_dist = jnp.full((n, vocab), eps, jnp.float32)
    true_dist = true_dist.at[jnp.arange(n), t_safe].set(confidence)
    log_prob = jax.nn.log_softmax(x, axis=-1)
    kl = true_dist * (jnp.log(true_dist) - log_prob)   # KLDivLoss 'none'
    kl = jnp.where(ignore[:, None], 0.0, kl)
    denom = total if normalize_length else jnp.float32(batch_size)
    return jnp.sum(kl) / denom


if __name__ == "__main__":
    key = jax.random.PRNGKey(0)
    k1, k2 = jax.random.split(key, 2)

    # Small shapes implied by the forward: preds (B, T, V), target (B, T).
    B, T, V = 2, 8, 16
    ignore_index = 0           # padding index
    beta = 0.1                 # opt.beta -> smoothing=0.1, confidence=0.9

    # bf16 logits on the wire (kernel upcasts internally).
    preds = jax.random.normal(k1, (B, T, V), dtype=jnp.float32).astype(jnp.bfloat16)

    # Valid tokens in [1, V); positions beyond per-row length are padding (=0).
    lengths = jnp.array([6, 5], dtype=jnp.int32)
    tok = jax.random.randint(k2, (B, T), 1, V)
    pos = jnp.arange(T)[None, :]
    target = jnp.where(pos < lengths[:, None], tok, ignore_index).astype(jnp.int32)

    loss = label_smoothing_loss(
        preds, target, beta=beta, ignore_index=ignore_index,
        normalize_length=True)
    loss = jax.block_until_ready(loss)

    ref = _reference(preds, target, beta=beta, ignore_index=ignore_index,
                     normalize_length=True)
    ref = jax.block_until_ready(ref)

    assert abs(float(loss) - float(ref)) <= 1e-4 * max(1.0, abs(float(ref))), (
        float(loss), float(ref))
    print("KERNEL_OK")
</pallas_src>

<mosaic_0001>
module attributes {stable_mosaic.version = 11 : i64} {
  func.func @_label_smoothing_kernel(%arg0: i32, %arg1: i32, %arg2: memref<16x16xbf16, #tpu.memory_space<vmem>>, %arg3: memref<16x1xi32, #tpu.memory_space<vmem>>, %arg4: memref<16x1xf32, #tpu.memory_space<vmem>>, %arg5: memref<16x1xf32, #tpu.memory_space<vmem>>, %arg6: memref<16x1xf32, #tpu.memory_space<vmem>>, %arg7: memref<16x1xf32, #tpu.memory_space<vmem>>, %arg8: memref<16x1xf32, #tpu.memory_space<vmem>>) attributes {dimension_semantics = [#tpu.dimension_semantics<parallel>, #tpu.dimension_semantics<arbitrary>], iteration_bounds = array<i64: 1, 1>, scalar_prefetch = 0 : i64, scratch_operands = 4 : i64, tpu.core_type = #tpu.core_type<tc>, window_params = [{transform_indices = @transform_0, window_bounds = array<i64: 16, 16>}, {transform_indices = @transform_1, window_bounds = array<i64: 16, 1>}, {transform_indices = @transform_2, window_bounds = array<i64: 16, 1>}]} {
    %c0_i32 = arith.constant 0 : i32
    %0 = arith.cmpi eq, %arg1, %c0_i32 : i32
    %1 = arith.extui %0 : i1 to i32
    %c0_i32_0 = arith.constant 0 : i32
    %2 = arith.cmpi ne, %1, %c0_i32_0 : i32
    scf.if %2 {
      %cst_28 = arith.constant 0xFF800000 : f32
      %48 = vector.broadcast %cst_28 : f32 to vector<16x1xf32>
      %c0_29 = arith.constant 0 : index
      %c0_30 = arith.constant 0 : index
      %49 = vector.load %arg5[%c0_29, %c0_30] : memref<16x1xf32, #tpu.memory_space<vmem>>, vector<16x1xf32>
      tpu.vector_store %arg5[%c0_29, %c0_30], %48 {strides = array<i32>} : memref<16x1xf32, #tpu.memory_space<vmem>>, vector<16x1xf32>,
      %cst_31 = arith.constant 0.000000e+00 : f32
      %50 = vector.broadcast %cst_31 : f32 to vector<16x1xf32>
      %c0_32 = arith.constant 0 : index
      %c0_33 = arith.constant 0 : index
      %51 = vector.load %arg6[%c0_32, %c0_33] : memref<16x1xf32, #tpu.memory_space<vmem>>, vector<16x1xf32>
      tpu.vector_store %arg6[%c0_32, %c0_33], %50 {strides = array<i32>} : memref<16x1xf32, #tpu.memory_space<vmem>>, vector<16x1xf32>,
      %cst_34 = arith.constant 0.000000e+00 : f32
      %52 = vector.broadcast %cst_34 : f32 to vector<16x1xf32>
      %c0_35 = arith.constant 0 : index
      %c0_36 = arith.constant 0 : index
      %53 = vector.load %arg7[%c0_35, %c0_36] : memref<16x1xf32, #tpu.memory_space<vmem>>, vector<16x1xf32>
      tpu.vector_store %arg7[%c0_35, %c0_36], %52 {strides = array<i32>} : memref<16x1xf32, #tpu.memory_space<vmem>>, vector<16x1xf32>,
      %cst_37 = arith.constant 0.000000e+00 : f32
      %54 = vector.broadcast %cst_37 : f32 to vector<16x1xf32>
      %c0_38 = arith.constant 0 : index
      %c0_39 = arith.constant 0 : index
      %55 = vector.load %arg8[%c0_38, %c0_39] : memref<16x1xf32, #tpu.memory_space<vmem>>, vector<16x1xf32>
      tpu.vector_store %arg8[%c0_38, %c0_39], %54 {strides = array<i32>} : memref<16x1xf32, #tpu.memory_space<vmem>>, vector<16x1xf32>,
    } else {
    }
    %c0 = arith.constant 0 : index
    %c0_1 = arith.constant 0 : index
    %3 = vector.load %arg2[%c0, %c0_1] : memref<16x16xbf16, #tpu.memory_space<vmem>>, vector<16x16xbf16>
    %cst = arith.constant dense<0xFF80> : vector<16xbf16>
    %4 = vector.multi_reduction <maximumf>, %3, %cst [1] : vector<16x16xbf16> to vector<16xbf16>
    %5 = vector.shape_cast %4 : vector<16xbf16> to vector<16x1xbf16>
    %6 = arith.extf %5 : vector<16x1xbf16> to vector<16x1xf32>
    %7 = arith.extf %3 : vector<16x16xbf16> to vector<16x16xf32>
    %c0_2 = arith.constant 0 : index
    %c0_3 = arith.constant 0 : index
    %8 = vector.load %arg5[%c0_2, %c0_3] : memref<16x1xf32, #tpu.memory_space<vmem>>, vector<16x1xf32>
    %9 = arith.maximumf %8, %6 : vector<16x1xf32>
    %10 = arith.subf %8, %9 : vector<16x1xf32>
    %11 = math.exp %10 : vector<16x1xf32>
    %c0_4 = arith.constant 0 : index
    %c0_5 = arith.constant 0 : index
    %12 = vector.load %arg6[%c0_4, %c0_5] : memref<16x1xf32, #tpu.memory_space<vmem>>, vector<16x1xf32>
    %13 = arith.mulf %11, %12 : vector<16x1xf32>
    %14 = vector.broadcast %9 : vector<16x1xf32> to vector<16x16xf32>
    %15 = arith.subf %7, %14 : vector<16x16xf32>
    %16 = math.exp %15 : vector<16x16xf32>
    %cst_6 = arith.constant dense<0.000000e+00> : vector<16xf32>
    %17 = vector.multi_reduction <add>, %16, %cst_6 [1] : vector<16x16xf32> to vector<16xf32>
    %18 = vector.shape_cast %17 : vector<16xf32> to vector<16x1xf32>
    %19 = arith.addf %13, %18 : vector<16x1xf32>
    %c0_7 = arith.constant 0 : index
    %c0_8 = arith.constant 0 : index
    %20 = vector.load %arg6[%c0_7, %c0_8] : memref<16x1xf32, #tpu.memory_space<vmem>>, vector<16x1xf32>
    tpu.vector_store %arg6[%c0_7, %c0_8], %19 {strides = array<i32>} : memref<16x1xf32, #tpu.memory_space<vmem>>, vector<16x1xf32>,
    %c0_9 = arith.constant 0 : index
    %c0_10 = arith.constant 0 : index
    %21 = vector.load %arg5[%c0_9, %c0_10] : memref<16x1xf32, #tpu.memory_space<vmem>>, vector<16x1xf32>
    tpu.vector_store %arg5[%c0_9, %c0_10], %9 {strides = array<i32>} : memref<16x1xf32, #tpu.memory_space<vmem>>, vector<16x1xf32>,
    %c0_11 = arith.constant 0 : index
    %c0_12 = arith.constant 0 : index
    %22 = vector.load %arg7[%c0_11, %c0_12] : memref<16x1xf32, #tpu.memory_space<vmem>>, vector<16x1xf32>
    %cst_13 = arith.constant dense<0.000000e+00> : vector<16xf32>
    %23 = vector.multi_reduction <add>, %7, %cst_13 [1] : vector<16x16xf32> to vector<16xf32>
    %24 = vector.shape_cast %23 : vector<16xf32> to vector<16x1xf32>
    %25 = arith.addf %22, %24 : vector<16x1xf32>
    %c0_14 = arith.constant 0 : index
    %c0_15 = arith.constant 0 : index
    %26 = vector.load %arg7[%c0_14, %c0_15] : memref<16x1xf32, #tpu.memory_space<vmem>>, vector<16x1xf32>
    tpu.vector_store %arg7[%c0_14, %c0_15], %25 {strides = array<i32>} : memref<16x1xf32, #tpu.memory_space<vmem>>, vector<16x1xf32>,
    %c0_16 = arith.constant 0 : index
    %c0_17 = arith.constant 0 : index
    %27 = vector.load %arg3[%c0_16, %c0_17] : memref<16x1xi32, #tpu.memory_space<vmem>>, vector<16x1xi32>
    %c0_i32_18 = arith.constant 0 : i32
    %28 = vector.broadcast %c0_i32_18 : i32 to vector<16x1xi32>
    %29 = arith.cmpi eq, %27, %28 : vector<16x1xi32>
    %c0_i32_19 = arith.constant 0 : i32
    %30 = vector.broadcast %c0_i32_19 : i32 to vector<16x1xi32>
    %31 = arith.select %29, %30, %27 : vector<16x1xi1>, vector<16x1xi32>
    %32 = tpu.iota {dimensions = array<i32: 1>} : vector<16x16xi32>
    %c16_i32 = arith.constant 16 : i32
    %33 = arith.muli %arg1, %c16_i32 : i32
    %34 = vector.broadcast %33 : i32 to vector<16x16xi32>
    %35 = arith.addi %32, %34 : vector<16x16xi32>
    %c0_20 = arith.constant 0 : index
    %c0_21 = arith.constant 0 : index
    %36 = vector.load %arg8[%c0_20, %c0_21] : memref<16x1xf32, #tpu.memory_space<vmem>>, vector<16x1xf32>
    %37 = vector.broadcast %31 : vector<16x1xi32> to vector<16x16xi32>
    %38 = arith.cmpi eq, %35, %37 : vector<16x16xi32>
    %cst_22 = arith.constant 0.000000e+00 : f32
    %39 = vector.broadcast %cst_22 : f32 to vector<16x16xf32>
    %40 = arith.select %38, %7, %39 : vector<16x16xi1>, vector<16x16xf32>
    %cst_23 = arith.constant dense<0.000000e+00> : vector<16xf32>
    %41 = vector.multi_reduction <add>, %40, %cst_23 [1] : vector<16x16xf32> to vector<16xf32>
    %42 = vector.shape_cast %41 : vector<16xf32> to vector<16x1xf32>
    %43 = arith.addf %36, %42 : vector<16x1xf32>
    %c0_24 = arith.constant 0 : index
    %c0_25 = arith.constant 0 : index
    %44 = vector.load %arg8[%c0_24, %c0_25] : memref<16x1xf32, #tpu.memory_space<vmem>>, vector<16x1xf32>
    tpu.vector_store %arg8[%c0_24, %c0_25], %43 {strides = array<i32>} : memref<16x1xf32, #tpu.memory_space<vmem>>, vector<16x1xf32>,
    %c0_i32_26 = arith.constant 0 : i32
    %45 = arith.cmpi eq, %arg1, %c0_i32_26 : i32
    %46 = arith.extui %45 : i1 to i32
    %c0_i32_27 = arith.constant 0 : i32
    %47 = arith.cmpi ne, %46, %c0_i32_27 : i32
    scf.if %47 {
      %c0_28 = arith.constant 0 : index
      %c0_29 = arith.constant 0 : index
      %48 = vector.load %arg6[%c0_28, %c0_29] : memref<16x1xf32, #tpu.memory_space<vmem>>, vector<16x1xf32>
      %49 = math.log %48 : vector<16x1xf32>
      %c0_30 = arith.constant 0 : index
      %c0_31 = arith.constant 0 : index
      %50 = vector.load %arg5[%c0_30, %c0_31] : memref<16x1xf32, #tpu.memory_space<vmem>>, vector<16x1xf32>
      %cst_32 = arith.constant -5.958880e-01 : f32
      %51 = vector.broadcast %cst_32 : f32 to vector<16x1xf32>
      %52 = arith.addf %51, %50 : vector<16x1xf32>
      %53 = arith.addf %52, %49 : vector<16x1xf32>
      %c0_33 = arith.constant 0 : index
      %c0_34 = arith.constant 0 : index
      %54 = vector.load %arg7[%c0_33, %c0_34] : memref<16x1xf32, #tpu.memory_space<vmem>>, vector<16x1xf32>
      %cst_35 = arith.constant 0.00666666683 : f32
      %55 = vector.broadcast %cst_35 : f32 to vector<16x1xf32>
      %56 = arith.mulf %55, %54 : vector<16x1xf32>
      %57 = arith.subf %53, %56 : vector<16x1xf32>
      %c0_36 = arith.constant 0 : index
      %c0_37 = arith.constant 0 : index
      %58 = vector.load %arg8[%c0_36, %c0_37] : memref<16x1xf32, #tpu.memory_space<vmem>>, vector<16x1xf32>
      %cst_38 = arith.constant 0.893333315 : f32
      %59 = vector.broadcast %cst_38 : f32 to vector<16x1xf32>
      %60 = arith.mulf %59, %58 : vector<16x1xf32>
      %61 = arith.subf %57, %60 : vector<16x1xf32>
      %c0_39 = arith.constant 0 : index
      %c0_40 = arith.constant 0 : index
      %62 = vector.load %arg3[%c0_39, %c0_40] : memref<16x1xi32, #tpu.memory_space<vmem>>, vector<16x1xi32>
      %c0_i32_41 = arith.constant 0 : i32
      %63 = vector.broadcast %c0_i32_41 : i32 to vector<16x1xi32>
      %64 = arith.cmpi eq, %62, %63 : vector<16x1xi32>
      %cst_42 = arith.constant 0.000000e+00 : f32
      %65 = vector.broadcast %cst_42 : f32 to vector<16x1xf32>
      %66 = arith.select %64, %65, %61 : vector<16x1xi1>, vector<16x1xf32>
      %c0_43 = arith.constant 0 : index
      %c0_44 = arith.constant 0 : index
      %67 = vector.load %arg4[%c0_43, %c0_44] : memref<16x1xf32, #tpu.memory_space<vmem>>, vector<16x1xf32>
      tpu.vector_store %arg4[%c0_43, %c0_44], %66 {strides = array<i32>} : memref<16x1xf32, #tpu.memory_space<vmem>>, vector<16x1xf32>,
    } else {
    }
    return
  }
  func.func @transform_0(%arg0: i32, %arg1: i32) -> (i32, i32) {
    %c0_i32 = arith.constant 0 : i32
    return %arg0, %arg1 : i32, i32
  }
  func.func @transform_1(%arg0: i32, %arg1: i32) -> (i32, i32) {
    %c0_i32 = arith.constant 0 : i32
    %c0_i32_0 = arith.constant 0 : i32
    return %arg0, %c0_i32 : i32, i32
  }
  func.func @transform_2(%arg0: i32, %arg1: i32) -> (i32, i32) {
    %c0_i32 = arith.constant 0 : i32
    %c0_i32_0 = arith.constant 0 : i32
    return %arg0, %c0_i32 : i32, i32
  }
}

</mosaic_0001>

<llo_original>
// kernel: tpu_custom_call.1
$region0: #{tpu_custom_call.1}
  #allocation0 [shape = 'u32[]', space=smem, size = 0x4, offset = 0x4, fixed_abs, tag = 'smem constant byte address 0x4 - core index']
  #allocation1 [shape = 'u32[144,128]{1,0:T(1,128)}', space=vmem, size = 0x12000, scoped, tag = 'internal scratch']
  #allocation2 [shape = 'f32[16,1]{1,0:T(8,128)}', space=vmem, size = 0x2000, scoped, tag = 'scratch operand']
  #allocation3 [shape = 'f32[16,1]{1,0:T(8,128)}', space=vmem, size = 0x2000, scoped, tag = 'scratch operand']
  #allocation4 [shape = 'f32[16,1]{1,0:T(8,128)}', space=vmem, size = 0x2000, scoped, tag = 'scratch operand']
  #allocation5 [shape = 'f32[16,1]{1,0:T(8,128)}', space=vmem, size = 0x2000, scoped, tag = 'scratch operand']
  %s0 = inlined_call_operand.vmem [shape: bf16[16,16], index: 0, kind: input, shape index: {}]
  %s1 = inlined_call_operand.vmem [shape: s32[16,1], index: 1, kind: input, shape index: {}]
  %s2 = inlined_call_operand.vmem [shape: f32[16,1], index: 2, kind: output, shape index: {}]
  %s3 = sld [smem:[#allocation0]]
  $region26: #{tpu_custom_call.1} parent=0
    _
  %s5 = ssub.s32 1, %s3
  %s6 = scalar_select 0, %s5, %s3
  // Predicated region
  $region2: #{tpu_custom_call.1} parent=0 // pred_check
    _
  $region3: #{tpu_custom_call.1} parent=0 // pred_check_branch
    %8 = sbr.rel (0) target = $region5
  $region4: #{tpu_custom_call.1} parent=0 // pred_region
    _
  $region5: #{tpu_custom_call.1} parent=0 // pred_fallthru
    _
  // Predicated region
  $region6: #{tpu_custom_call.1} parent=0 // pred_check
    _
  $region7: #{tpu_custom_call.1} parent=0 // pred_check_branch
    %10 = sbr.rel (0) target = $region9
  $region8: #{tpu_custom_call.1} parent=0 // pred_region
    _
  $region9: #{tpu_custom_call.1} parent=0 // pred_fallthru
    _
  %p12 = scmp.eq.s32.totalorder 0, 0
  // Predicated region
  $region10: #{tpu_custom_call.1} parent=0 // pred_check
    %p13 = pneg %p12
  $region11: #{tpu_custom_call.1} parent=0 // pred_check_branch
    %15 = sbr.rel (%p13) target = $region13
  $region12: #{tpu_custom_call.1} parent=0 // pred_region
    %vm16 = vcmask 7168
    %17 = vst.msk [vmem:[#allocation2] sm:$0xff] %vm16, -inf
    %18 = vst.msk [vmem:[#allocation2 + $0x8] sm:$0xff] %vm16, -inf
    %19 = vst.msk [vmem:[#allocation3] sm:$0xff] %vm16, 0.0
    %20 = vst.msk [vmem:[#allocation3 + $0x8] sm:$0xff] %vm16, 0.0
    %21 = vst.msk [vmem:[#allocation4] sm:$0xff] %vm16, 0.0
    %22 = vst.msk [vmem:[#allocation4 + $0x8] sm:$0xff] %vm16, 0.0
    %23 = vst.msk [vmem:[#allocation5] sm:$0xff] %vm16, 0.0
    %24 = vst.msk [vmem:[#allocation5 + $0x8] sm:$0xff] %vm16, 0.0
  $region13: #{tpu_custom_call.1} parent=0 // pred_fallthru
    _
  %v25 = vld [vmem:[%s0] sm:$0xf]
  %v26 = vld [vmem:[%s0 + $0x4] sm:$0xf]
  %v29 = vunpack.c.l.b16 %v25
  %v30 = vunpack.c.l.b16 %v26
  %v31 = vpack.c.b16 %v30, %v29
  %vm32 = vcmask 130048
  %v35 = vsel %vm32, %v31, 4286644096
  %37 = vmax.xlane.bf16.xlu0 %v35
  %v38 = vpop.xlane.xlu0 %37
  %v39 = vunpack.c.l.bf16 %v38
  %v40 = vunpack.c.h.bf16 %v38
  %v41 = vunpack.c.l.bf16 %v25
  %v42 = vunpack.c.l.bf16 %v26
  %v43 = vld [vmem:[#allocation2] sm:$0xff]
  %v44 = vld [vmem:[#allocation2 + $0x8] sm:$0xff]
  %v45 = vmax.f32 %v43, %v39
  %v46 = vmax.f32 %v44, %v40
  %v47 = vsub.f32 %v43, %v45
  %v48 = vsub.f32 %v44, %v46
  %v49 = vmul.f32 %v47, 1.442695
  %v50 = vpow.pop %v49
  %v51 = vmul.f32 %v48, 1.442695
  %v52 = vpow.pop %v51
  %v53 = vld [vmem:[#allocation3] sm:$0xff]
  %v54 = vld [vmem:[#allocation3 + $0x8] sm:$0xff]
  %v55 = vmul.f32 %v50, %v53
  %v56 = vmul.f32 %v52, %v54
  %58 = vset.pattern.permute.xlu0 0
  %59 = vperm.xlu0 %58, %v45
  %v60 = vpop.permute.xlu0 %59
  %63 = vset.pattern.permute.xlu0 0
  %64 = vperm.xlu0 %63, %v46
  %v65 = vpop.permute.xlu0 %64
  %v67 = vsub.f32 %v41, %v60
  %v68 = vsub.f32 %v42, %v65
  %v69 = vmul.f32 %v67, 1.442695
  %v70 = vpow.pop %v69
  %v71 = vmul.f32 %v68, 1.442695
  %v72 = vpow.pop %v71
  %v73 = vsel %vm32, %v70, 0.0
  %74 = vadd.xlane.f32.xlu0 %v73
  %v75 = vpop.xlane.xlu0 %74
  %v76 = vsel %vm32, %v72, 0.0
  %77 = vadd.xlane.f32.xlu0 %v76
  %v78 = vpop.xlane.xlu0 %77
  %v79 = vadd.f32 %v55, %v75
  %v80 = vadd.f32 %v56, %v78
  %vm81 = vcmask 7168
  %82 = vst.msk [vmem:[#allocation3] sm:$0xff] %vm81, %v79
  %83 = vst.msk [vmem:[#allocation3 + $0x8] sm:$0xff] %vm81, %v80
  %84 = vst.msk [vmem:[#allocation2] sm:$0xff] %vm81, %v45
  %85 = vst.msk [vmem:[#allocation2 + $0x8] sm:$0xff] %vm81, %v46
  %v86 = vld [vmem:[#allocation4] sm:$0xff]
  %v87 = vld [vmem:[#allocation4 + $0x8] sm:$0xff]
  %v88 = vsel %vm32, %v41, 0.0
  %89 = vadd.xlane.f32.xlu0 %v88
  %v90 = vpop.xlane.xlu0 %89
  %v91 = vsel %vm32, %v42, 0.0
  %92 = vadd.xlane.f32.xlu0 %v91
  %v93 = vpop.xlane.xlu0 %92
  %v94 = vadd.f32 %v86, %v90
  %v95 = vadd.f32 %v87, %v93
  %96 = vst.msk [vmem:[#allocation4] sm:$0xff] %vm81, %v94
  %97 = vst.msk [vmem:[#allocation4 + $0x8] sm:$0xff] %vm81, %v95
  %v98 = vld [vmem:[%s1] sm:$0xff]
  %v99 = vld [vmem:[%s1 + $0x8] sm:$0xff]
  %v100 = vlaneseq
  %v101 = vand.u32 %v100, 127
  %s102 = smul.u32 0, 16
  %v103 = vstv %s102
  %v104 = vadd.s32 %v101, %v103
  %v105 = vld [vmem:[#allocation5] sm:$0xff]
  %v106 = vld [vmem:[#allocation5 + $0x8] sm:$0xff]
  %107 = vset.pattern.permute.xlu0 0
  %108 = vperm.xlu0 %107, %v98
  %v109 = vpop.permute.xlu0 %108
  %110 = vset.pattern.permute.xlu0 0
  %111 = vperm.xlu0 %110, %v99
  %v112 = vpop.permute.xlu0 %111
  %vm113 = vcmp.eq.s32.totalorder %v104, %v109
  %vm114 = vcmp.eq.s32.totalorder %v104, %v112
  %v115 = vsel %vm113, %v41, 0.0
  %v116 = vsel %vm114, %v42, 0.0
  %v117 = vsel %vm32, %v115, 0.0
  %118 = vadd.xlane.f32.xlu0 %v117
  %v119 = vpop.xlane.xlu0 %118
  %v120 = vsel %vm32, %v116, 0.0
  %121 = vadd.xlane.f32.xlu0 %v120
  %v122 = vpop.xlane.xlu0 %121
  %v123 = vadd.f32 %v105, %v119
  %v124 = vadd.f32 %v106, %v122
  %125 = vst.msk [vmem:[#allocation5] sm:$0xff] %vm81, %v123
  %126 = vst.msk [vmem:[#allocation5 + $0x8] sm:$0xff] %vm81, %v124
  // Predicated region
  $region14: #{tpu_custom_call.1} parent=0 // pred_check
    %p127 = pneg %p12
  $region15: #{tpu_custom_call.1} parent=0 // pred_check_branch
    %129 = sbr.rel (%p127) target = $region17
  $region16: #{tpu_custom_call.1} parent=0 // pred_region
    %v130 = vld [vmem:[#allocation3] sm:$0xff]
    %v131 = vld [vmem:[#allocation3 + $0x8] sm:$0xff]
    %v132 = vlog2.pop %v130
    %v133 = vmul.f32 %v132, 0.6931472
    %v134 = vlog2.pop %v131
    %v135 = vmul.f32 %v134, 0.6931472
    %v136 = vld [vmem:[#allocation2] sm:$0xff]
    %v137 = vld [vmem:[#allocation2 + $0x8] sm:$0xff]
    %v138 = vadd.f32 %v136, -0.595888
    %v139 = vadd.f32 %v137, -0.595888
    %v140 = vadd.f32 %v138, %v133
    %v141 = vadd.f32 %v139, %v135
    %v142 = vld [vmem:[#allocation4] sm:$0xff]
    %v143 = vld [vmem:[#allocation4 + $0x8] sm:$0xff]
    %v144 = vmul.f32 %v142, 0.006666667
    %v145 = vmul.f32 %v143, 0.006666667
    %v146 = vsub.f32 %v140, %v144
    %v147 = vsub.f32 %v141, %v145
    %v148 = vld [vmem:[#allocation5] sm:$0xff]
    %v149 = vld [vmem:[#allocation5 + $0x8] sm:$0xff]
    %v150 = vmul.f32 %v148, 0.8933333
    %v151 = vmul.f32 %v149, 0.8933333
    %v152 = vsub.f32 %v146, %v150
    %v153 = vsub.f32 %v147, %v151
    %v154 = vld [vmem:[%s1] sm:$0xff]
    %v155 = vld [vmem:[%s1 + $0x8] sm:$0xff]
    %vm156 = vcmp.eq.s32.totalorder %v154, 0
    %vm157 = vcmp.eq.s32.totalorder %v155, 0
    %v158 = vsel %vm156, 0.0, %v152
    %v159 = vsel %vm157, 0.0, %v153
    %160 = vst.msk [vmem:[%s2] sm:$0xff] %vm81, %v158
    %161 = vst.msk [vmem:[%s2 + $0x8] sm:$0xff] %vm81, %v159
  $region17: #{tpu_custom_call.1} parent=0 // pred_fallthru
    _
  // Predicated region
  $region18: #{tpu_custom_call.1} parent=0 // pred_check
    _
  $region19: #{tpu_custom_call.1} parent=0 // pred_check_branch
    %163 = sbr.rel (0) target = $region21
  $region20: #{tpu_custom_call.1} parent=0 // pred_region
    _
  $region21: #{tpu_custom_call.1} parent=0 // pred_fallthru
    _
  // Predicated region
  $region22: #{tpu_custom_call.1} parent=0 // pred_check
    _
  $region23: #{tpu_custom_call.1} parent=0 // pred_check_branch
    %165 = sbr.rel (0) target = $region25
  $region24: #{tpu_custom_call.1} parent=0 // pred_region
    _
  $region25: #{tpu_custom_call.1} parent=0 // pred_fallthru
    _

</llo_original>
